<compile_context>
chip_gen: v7x
topology: tpu7x:2x2x1
jax: 0.10.0
libtpu: 0.0.40
codegen_flags: <defaults>
</compile_context>

<pallas_src>
import functools

import jax
import jax.numpy as jnp
import numpy as np
from jax.experimental import pallas as pl
from jax.experimental.pallas import tpu as pltpu


# ----------------------------------------------------------------------------
# Hardware / tiling helpers.
# ----------------------------------------------------------------------------
def _vmem_capacity_bytes():
    try:
        info = pltpu.get_tpu_info()
        for name in ("vmem_capacity_bytes", "vmem_size_bytes", "vmem_bytes"):
            v = getattr(info, name, None)
            if v:
                return int(v)
    except Exception:
        pass
    return 128 << 20  # v5e/v6e physical; the v7x path still fits under 64 MiB.


def _pick_rows_tile(dh, row_bytes, align, budget_bytes):
    """Rows (of the packed D*H axis) per grid step -> (tile, num_tiles, pad_rows)."""
    cap = max(align, (budget_bytes // max(1, row_bytes)) // align * align)
    if dh <= cap:
        return dh, 1, 0                      # one full-extent block, no padding
    # Prefer a large aligned divisor (no padding) ...
    floor = max(align, (cap // 2) // align * align)
    t = cap
    while t >= floor:
        if dh % t == 0:
            return t, dh // t, 0
        t -= align
    # ... otherwise cdiv + zero-pad the tail (corrected exactly in glue).
    n = -(-dh // cap)
    return cap, n, n * cap - dh


def _pick_chunk(rows, c, wp, k):
    """In-kernel sub-chunk: keep the f32 softmax temps and the one-hot tile small."""
    cap = min(64, rows)
    cap = min(cap, max(1, (1 << 20) // max(1, wp * k * 4)))    # one-hot <= ~1 MiB
    cap = min(cap, max(1, (1 << 19) // max(1, c * wp * 4)))    # softmax temps small
    cap = max(1, cap)
    best = 1
    for cand in range(cap, 0, -1):
        if rows % cand == 0:
            if cand % 8 == 0:
                return cand                  # prefer sublane-aligned chunk offsets
            if best == 1:
                best = cand
    return best


# ----------------------------------------------------------------------------
# Fused kernel: channel softmax + D*H reduction + vectorized label histogram.
#   grid = (B, P, n_k); outputs are the resident accumulators (no scratch).
# ----------------------------------------------------------------------------
def _size_loss_kernel(x_ref, t_ref, oc_ref, cnt_ref, *, n_classes, chunk):
    """
    x_ref  : (C, T, Wp)  activations (any float dtype; upcast to f32 in-register)
    t_ref  : (T, Wp)     int32 labels (padded rows hold -1)
    oc_ref : (C, Wp)     f32 accumulator  = sum over D*H of softmax_C
    cnt_ref: (K, 1)      i32 accumulator  = per-class voxel counts (exact)
    """
    k = pl.program_id(2)

    @pl.when(k == 0)
    def _init():
        oc_ref[...] = jnp.zeros(oc_ref.shape, jnp.float32)
        cnt_ref[...] = jnp.zeros(cnt_ref.shape, jnp.int32)

    rows = x_ref.shape[1]
    n_chunks = rows // chunk
    # Hoisted out of the loop (JAX does not CSE broadcasts inside loops).
    classes = jax.lax.broadcasted_iota(jnp.int32, (1, n_classes, 1), 1)

    def body(i, carry):
        r = pl.multiple_of(i * chunk, chunk)

        # --- channel softmax, partially reduced over this chunk's rows ----------
        x = x_ref[:, pl.ds(r, chunk), :].astype(jnp.float32)      # (C, chunk, Wp)
        m = jnp.max(x, axis=0, keepdims=True)
        e = jnp.exp(x - m)
        inv = pl.reciprocal(jnp.sum(e, axis=0, keepdims=True), approx=True)  # EUP
        oc_ref[...] += jnp.sum(e * inv, axis=1)                   # (C, Wp)

        # --- vectorized label histogram: one-hot compare, lane-dense on Wp ------
        t = t_ref[pl.ds(r, chunk), :].astype(jnp.int32)           # (chunk, Wp)
        onehot = (t[:, None, :] == classes).astype(jnp.int32)     # (chunk, K, Wp)
        cnt_ref[...] += jnp.sum(jnp.sum(onehot, axis=0), axis=1, keepdims=True)
        return carry

    jax.lax.fori_loop(0, n_chunks, body, 0)


# ----------------------------------------------------------------------------
# Full SizeLoss forward.
# ----------------------------------------------------------------------------
def size_loss(output, target, margin=0.1, *, block_budget_bytes=None):
    """output: (B, C, D, H, W) float logits; target: (B, 1, D, H, W) int labels."""
    B, C, D, H, W = output.shape
    DH = D * H

    x = output.reshape(B, C, DH, W)                 # contiguous glue reshapes only
    # TODO(synk): torch.unique with runtime-dependent cardinality has no static-shape
    # equivalent; labels are assumed to be exactly {0..W-1} (the module's
    # target_counts[b,:]=counts broadcast already requires exactly W unique values).
    # For v5e bandwidth, labels may be passed as int8/int16 upstream; kernel upcasts.
    t = target.reshape(B, DH, W).astype(jnp.int32)

    # ---- lane packing: fold G rows of D*H into the lane axis when W < 128 -------
    G = 1
    if W < 128 and 128 % W == 0:
        g = 128 // W
        while g > 1 and DH % g != 0:
            g //= 2
        G = g
    Wp, DHg = G * W, DH // G
    x = x.reshape(B, C, DHg, Wp)
    t = t.reshape(B, DHg, Wp)

    itemsize = jnp.dtype(output.dtype).itemsize
    align = {1: 32, 2: 16}.get(itemsize, 8)          # dtype-aware sublane alignment
    vmem_cap = _vmem_capacity_bytes()
    if block_budget_bytes is None:
        block_budget_bytes = int(min(8 << 20, max(2 << 20, vmem_cap // 16)))
    row_bytes = (C * itemsize + 4) * Wp              # one packed D*H row of x + t
    T, n_total, pad_rows = _pick_rows_tile(DHg, row_bytes, align, block_budget_bytes)

    # v7x megacore: guarantee >= 2 independent parallel grid units when B == 1.
    P = 1
    if B == 1 and n_total >= 2:
        if n_total % 2:
            pad_rows += T
            n_total += 1
        P = 2
    n_k = n_total // P

    if pad_rows:
        # Zero activations in padded rows contribute exactly 1/C per lane (removed in
        # glue below); -1 labels never match any class in the histogram.
        x = jnp.pad(x, ((0, 0), (0, 0), (0, pad_rows), (0, 0)))
        t = jnp.pad(t, ((0, 0), (0, pad_rows), (0, 0)), constant_values=-1)

    chunk = _pick_chunk(T, C, Wp, W)

    # Explicit scoped-VMEM budget: double-buffered blocks + in-kernel chunk temps
    # + headroom, capped well below physical VMEM (important on v7x's 64 MiB).
    blk_x = C * T * Wp * itemsize
    blk_t = T * Wp * 4
    blk_o = (C * Wp + W) * 4
    tmp = 4 * C * chunk * Wp * 4 + chunk * W * Wp * 4
    vmem_limit = int(min(vmem_cap * 3 // 4,
                         2 * (blk_x + blk_t + blk_o) + tmp + (8 << 20)))

    cost = pl.CostEstimate(
        flops=int(6 * B * C * DH * W + 2 * B * DH * W * W),
        transcendentals=int(B * C * DH * W),
        bytes_accessed=int(B * C * DH * W * itemsize + B * DH * W * 4
                           + B * P * (C * Wp + W) * 4),
    )

    # NOTE(perf, v6e): if DMA latency is exposed at the chosen tile, sweep
    # `pipeline_mode=pl.Buffered(3)` on the x BlockSpec (costs one extra buffer).
    oc_parts, cnt_parts = pl.pallas_call(
        functools.partial(_size_loss_kernel, n_classes=W, chunk=chunk),
        out_shape=(jax.ShapeDtypeStruct((B, P, C, Wp), jnp.float32),
                   jax.ShapeDtypeStruct((B, P, W, 1), jnp.int32)),
        grid=(B, P, n_k),
        in_specs=[
            pl.BlockSpec((None, C, T, Wp), lambda b, p, k: (b, 0, p * n_k + k, 0)),
            pl.BlockSpec((None, T, Wp), lambda b, p, k: (b, p * n_k + k, 0)),
        ],
        out_specs=(
            pl.BlockSpec((None, None, C, Wp), lambda b, p, k: (b, p, 0, 0)),
            pl.BlockSpec((None, None, W, 1), lambda b, p, k: (b, p, 0, 0)),
        ),
        compiler_params=pltpu.CompilerParams(
            dimension_semantics=("parallel", "parallel", "arbitrary"),
            vmem_limit_bytes=vmem_limit),
        cost_estimate=cost,
    )(x, t)

    # ---- tiny XLA epilogue on (B, C, W)-sized tensors ----------------------------
    oc = jnp.sum(oc_parts, axis=1)                            # (B, C, Wp)
    if pad_rows:
        oc = oc - (float(pad_rows) / float(C))                # remove uniform pad term
    oc = oc.reshape(B, C, G, W).sum(axis=2)                   # unfold lane packing
    counts = jnp.sum(cnt_parts, axis=1)[:, :, 0].astype(jnp.float32)  # (B, W)

    lower = counts[:, None, :] * (1.0 - float(margin))
    upper = counts[:, None, :] * (1.0 + float(margin))
    res = (jnp.where(oc < lower, (oc - lower) ** 2, 0.0)
           + jnp.where(oc > upper, (oc - upper) ** 2, 0.0))
    # Original module: channels 1: only, divide by D*H*W, then mean.
    return jnp.mean(res[:, 1:, :]) / float(D * H * W)


# ----------------------------------------------------------------------------
# Pure-JAX reference (same semantics) for numeric sanity checks (toy shapes).
# ----------------------------------------------------------------------------
def size_loss_ref(output, target, margin=0.1):
    B, C, D, H, W = output.shape
    oc = jnp.sum(jax.nn.softmax(output.astype(jnp.float32), axis=1), axis=(2, 3))
    flat = target.reshape(B, -1)
    classes = jnp.arange(W, dtype=flat.dtype)
    counts = jnp.sum((flat[:, :, None] == classes[None, None, :])
                     .astype(jnp.float32), axis=1)            # (B, W), class order
    tc = counts[:, None, :]
    lower, upper = tc * (1 - margin), tc * (1 + margin)
    res = ((oc < lower).astype(jnp.float32) * (oc - lower) ** 2
           + (oc > upper).astype(jnp.float32) * (oc - upper) ** 2)
    return jnp.mean(res[:, 1:, :]) / float(D * H * W)


if __name__ == "__main__":
    key = jax.random.PRNGKey(0)
    k1, k2, k3, k4 = jax.random.split(key, 4)

    # Case 1: small, exactly-tiling shapes (B-parallel grid, lane packing G=16).
    B, C, D, H, W = 2, 4, 4, 8, 8
    output = jax.random.normal(k1, (B, C, D, H, W), dtype=jnp.float32)
    target = jax.random.randint(k2, (B, 1, D, H, W), 0, W, dtype=jnp.int32)
    # Force every class present per batch (the module's counts broadcast needs it).
    target = target.at[:, 0, 0, 0, :].set(jnp.arange(W, dtype=jnp.int32))
    loss = jax.block_until_ready(size_loss(output, target))
    loss_ref = jax.block_until_ready(size_loss_ref(output, target))
    assert np.isfinite(float(loss))
    # Relaxed tolerance: the kernel uses the EUP approximate reciprocal in the
    # softmax denominator; error is << 1% after the spatial sum and hinge^2.
    assert np.allclose(float(loss), float(loss_ref), rtol=1e-2, atol=1e-5), (
        float(loss), float(loss_ref))

    # Case 2: B=1 (exercises the 2-way megacore split), a D*H that does not divide
    # the tile (exercises cdiv + zero-pad + glue correction) and a tiny block
    # budget (exercises multi-step accumulation along the arbitrary grid axis).
    B, C, D, H, W = 1, 3, 4, 100, 8
    output = jax.random.normal(k3, (B, C, D, H, W), dtype=jnp.float32)
    target = jax.random.randint(k4, (B, 1, D, H, W), 0, W, dtype=jnp.int32)
    target = target.at[:, 0, 0, 0, :].set(jnp.arange(W, dtype=jnp.int32))
    loss2 = jax.block_until_ready(size_loss(output, target, block_budget_bytes=4096))
    loss2_ref = jax.block_until_ready(size_loss_ref(output, target))
    assert np.isfinite(float(loss2))
    assert np.allclose(float(loss2), float(loss2_ref), rtol=1e-2, atol=1e-5), (
        float(loss2), float(loss2_ref))

    print("KERNEL_OK")
</pallas_src>

<mosaic_0001>
module attributes {stable_mosaic.version = 11 : i64} {
  func.func @_size_loss_kernel(%arg0: i32, %arg1: i32, %arg2: i32, %arg3: memref<1x4x2x128xf32, #tpu.memory_space<vmem>>, %arg4: memref<1x2x128xi32, #tpu.memory_space<vmem>>, %arg5: memref<1x1x4x128xf32, #tpu.memory_space<vmem>>, %arg6: memref<1x1x8x1xi32, #tpu.memory_space<vmem>>) attributes {dimension_semantics = [#tpu.dimension_semantics<parallel>, #tpu.dimension_semantics<parallel>, #tpu.dimension_semantics<arbitrary>], iteration_bounds = array<i64: 2, 1, 1>, scalar_prefetch = 0 : i64, scratch_operands = 0 : i64, tpu.core_type = #tpu.core_type<tc>, window_params = [{transform_indices = @transform_0, window_bounds = array<i64: 1, 4, 2, 128>}, {transform_indices = @transform_1, window_bounds = array<i64: 1, 2, 128>}, {transform_indices = @transform_2, window_bounds = array<i64: 1, 1, 4, 128>}, {transform_indices = @transform_3, window_bounds = array<i64: 1, 1, 8, 1>}]} {
    %c0_i32 = arith.constant 0 : i32
    %0 = arith.cmpi eq, %arg2, %c0_i32 : i32
    %1 = arith.extui %0 : i1 to i32
    %c0_i32_0 = arith.constant 0 : i32
    %2 = arith.cmpi ne, %1, %c0_i32_0 : i32
    scf.if %2 {
      %cst_26 = arith.constant 0.000000e+00 : f32
      %43 = vector.broadcast %cst_26 : f32 to vector<4x128xf32>
      %c0_27 = arith.constant 0 : index
      %c0_28 = arith.constant 0 : index
      %c0_29 = arith.constant 0 : index
      %c0_30 = arith.constant 0 : index
      %44 = vector.load %arg5[%c0_27, %c0_28, %c0_29, %c0_30] : memref<1x1x4x128xf32, #tpu.memory_space<vmem>>, vector<1x1x4x128xf32>
      %45 = vector.shape_cast %44 : vector<1x1x4x128xf32> to vector<4x128xf32>
      %46 = vector.shape_cast %43 : vector<4x128xf32> to vector<1x1x4x128xf32>
      tpu.vector_store %arg5[%c0_27, %c0_28, %c0_29, %c0_30], %46 {strides = array<i32>} : memref<1x1x4x128xf32, #tpu.memory_space<vmem>>, vector<1x1x4x128xf32>,
      %c0_i32_31 = arith.constant 0 : i32
      %47 = vector.broadcast %c0_i32_31 : i32 to vector<8x1xi32>
      %c0_32 = arith.constant 0 : index
      %c0_33 = arith.constant 0 : index
      %c0_34 = arith.constant 0 : index
      %c0_35 = arith.constant 0 : index
      %48 = vector.load %arg6[%c0_32, %c0_33, %c0_34, %c0_35] : memref<1x1x8x1xi32, #tpu.memory_space<vmem>>, vector<1x1x8x1xi32>
      %49 = vector.shape_cast %48 : vector<1x1x8x1xi32> to vector<8x1xi32>
      %50 = vector.shape_cast %47 : vector<8x1xi32> to vector<1x1x8x1xi32>
      tpu.vector_store %arg6[%c0_32, %c0_33, %c0_34, %c0_35], %50 {strides = array<i32>} : memref<1x1x8x1xi32, #tpu.memory_space<vmem>>, vector<1x1x8x1xi32>,
    } else {
    }
    %3 = tpu.iota {dimensions = array<i32: 1>} : vector<1x8x1xi32>
    %c0_i32_1 = arith.constant 0 : i32
    %c2_i32 = arith.constant 2 : i32
    %4 = arith.muli %c0_i32_1, %c2_i32 : i32
    %5 = tpu.assume_multiple %4, 2 : i32
    %c0 = arith.constant 0 : index
    %c0_2 = arith.constant 0 : index
    %6 = arith.index_cast %5 : i32 to index
    %c0_3 = arith.constant 0 : index
    %7 = vector.load %arg3[%c0, %c0_2, %6, %c0_3] : memref<1x4x2x128xf32, #tpu.memory_space<vmem>>, vector<1x4x2x128xf32>
    %8 = vector.shape_cast %7 : vector<1x4x2x128xf32> to vector<4x2x128xf32>
    %cst = arith.constant dense<0xFF800000> : vector<2x128xf32>
    %9 = vector.multi_reduction <maximumf>, %8, %cst [0] : vector<4x2x128xf32> to vector<2x128xf32>
    %10 = vector.shape_cast %9 : vector<2x128xf32> to vector<1x2x128xf32>
    %11 = vector.broadcast %10 : vector<1x2x128xf32> to vector<4x2x128xf32>
    %12 = arith.subf %8, %11 : vector<4x2x128xf32>
    %13 = math.exp %12 : vector<4x2x128xf32>
    %cst_4 = arith.constant dense<0.000000e+00> : vector<2x128xf32>
    %14 = vector.multi_reduction <add>, %13, %cst_4 [0] : vector<4x2x128xf32> to vector<2x128xf32>
    %15 = vector.shape_cast %14 : vector<2x128xf32> to vector<1x2x128xf32>
    %16 = tpu.reciprocal %15 {approx = true} : vector<1x2x128xf32> -> vector<1x2x128xf32>
    %c0_5 = arith.constant 0 : index
    %c0_6 = arith.constant 0 : index
    %c0_7 = arith.constant 0 : index
    %c0_8 = arith.constant 0 : index
    %17 = vector.load %arg5[%c0_5, %c0_6, %c0_7, %c0_8] : memref<1x1x4x128xf32, #tpu.memory_space<vmem>>, vector<1x1x4x128xf32>
    %18 = vector.shape_cast %17 : vector<1x1x4x128xf32> to vector<4x128xf32>
    %19 = vector.broadcast %16 : vector<1x2x128xf32> to vector<4x2x128xf32>
    %20 = arith.mulf %13, %19 : vector<4x2x128xf32>
    %cst_9 = arith.constant dense<0.000000e+00> : vector<4x128xf32>
    %21 = vector.multi_reduction <add>, %20, %cst_9 [1] : vector<4x2x128xf32> to vector<4x128xf32>
    %22 = arith.addf %18, %21 : vector<4x128xf32>
    %c0_10 = arith.constant 0 : index
    %c0_11 = arith.constant 0 : index
    %c0_12 = arith.constant 0 : index
    %c0_13 = arith.constant 0 : index
    %23 = vector.load %arg5[%c0_10, %c0_11, %c0_12, %c0_13] : memref<1x1x4x128xf32, #tpu.memory_space<vmem>>, vector<1x1x4x128xf32>
    %24 = vector.shape_cast %23 : vector<1x1x4x128xf32> to vector<4x128xf32>
    %25 = vector.shape_cast %22 : vector<4x128xf32> to vector<1x1x4x128xf32>
    tpu.vector_store %arg5[%c0_10, %c0_11, %c0_12, %c0_13], %25 {strides = array<i32>} : memref<1x1x4x128xf32, #tpu.memory_space<vmem>>, vector<1x1x4x128xf32>,
    %c0_14 = arith.constant 0 : index
    %26 = arith.index_cast %5 : i32 to index
    %c0_15 = arith.constant 0 : index
    %27 = vector.load %arg4[%c0_14, %26, %c0_15] : memref<1x2x128xi32, #tpu.memory_space<vmem>>, vector<1x2x128xi32>
    %28 = vector.shape_cast %27 : vector<1x2x128xi32> to vector<2x128xi32>
    %29 = vector.shape_cast %28 : vector<2x128xi32> to vector<2x1x128xi32>
    %30 = vector.broadcast %29 : vector<2x1x128xi32> to vector<2x8x128xi32>
    %31 = vector.broadcast %3 : vector<1x8x1xi32> to vector<2x8x128xi32>
    %32 = arith.cmpi eq, %30, %31 : vector<2x8x128xi32>
    %33 = arith.extui %32 : vector<2x8x128xi1> to vector<2x8x128xi32>
    %c0_16 = arith.constant 0 : index
    %c0_17 = arith.constant 0 : index
    %c0_18 = arith.constant 0 : index
    %c0_19 = arith.constant 0 : index
    %34 = vector.load %arg6[%c0_16, %c0_17, %c0_18, %c0_19] : memref<1x1x8x1xi32, #tpu.memory_space<vmem>>, vector<1x1x8x1xi32>
    %35 = vector.shape_cast %34 : vector<1x1x8x1xi32> to vector<8x1xi32>
    %cst_20 = arith.constant dense<0> : vector<8x128xi32>
    %36 = vector.multi_reduction <add>, %33, %cst_20 [0] : vector<2x8x128xi32> to vector<8x128xi32>
    %cst_21 = arith.constant dense<0> : vector<8xi32>
    %37 = vector.multi_reduction <add>, %36, %cst_21 [1] : vector<8x128xi32> to vector<8xi32>
    %38 = vector.shape_cast %37 : vector<8xi32> to vector<8x1xi32>
    %39 = arith.addi %35, %38 : vector<8x1xi32>
    %c0_22 = arith.constant 0 : index
    %c0_23 = arith.constant 0 : index
    %c0_24 = arith.constant 0 : index
    %c0_25 = arith.constant 0 : index
    %40 = vector.load %arg6[%c0_22, %c0_23, %c0_24, %c0_25] : memref<1x1x8x1xi32, #tpu.memory_space<vmem>>, vector<1x1x8x1xi32>
    %41 = vector.shape_cast %40 : vector<1x1x8x1xi32> to vector<8x1xi32>
    %42 = vector.shape_cast %39 : vector<8x1xi32> to vector<1x1x8x1xi32>
    tpu.vector_store %arg6[%c0_22, %c0_23, %c0_24, %c0_25], %42 {strides = array<i32>} : memref<1x1x8x1xi32, #tpu.memory_space<vmem>>, vector<1x1x8x1xi32>,
    %c1_i32 = arith.constant 1 : i32
    return
  }
  func.func @transform_0(%arg0: i32, %arg1: i32, %arg2: i32) -> (i32, i32, i32, i32) {
    %c1_i32 = arith.constant 1 : i32
    %0 = arith.muli %arg1, %c1_i32 : i32
    %1 = arith.addi %0, %arg2 : i32
    %c0_i32 = arith.constant 0 : i32
    %c0_i32_0 = arith.constant 0 : i32
    %c0_i32_1 = arith.constant 0 : i32
    return %arg0, %c0_i32, %1, %c0_i32_0 : i32, i32, i32, i32
  }
  func.func @transform_1(%arg0: i32, %arg1: i32, %arg2: i32) -> (i32, i32, i32) {
    %c1_i32 = arith.constant 1 : i32
    %0 = arith.muli %arg1, %c1_i32 : i32
    %1 = arith.addi %0, %arg2 : i32
    %c0_i32 = arith.constant 0 : i32
    %c0_i32_0 = arith.constant 0 : i32
    return %arg0, %1, %c0_i32 : i32, i32, i32
  }
  func.func @transform_2(%arg0: i32, %arg1: i32, %arg2: i32) -> (i32, i32, i32, i32) {
    %c0_i32 = arith.constant 0 : i32
    %c0_i32_0 = arith.constant 0 : i32
    %c0_i32_1 = arith.constant 0 : i32
    return %arg0, %arg1, %c0_i32, %c0_i32_0 : i32, i32, i32, i32
  }
  func.func @transform_3(%arg0: i32, %arg1: i32, %arg2: i32) -> (i32, i32, i32, i32) {
    %c0_i32 = arith.constant 0 : i32
    %c0_i32_0 = arith.constant 0 : i32
    %c0_i32_1 = arith.constant 0 : i32
    return %arg0, %arg1, %c0_i32, %c0_i32_0 : i32, i32, i32, i32
  }
}

</mosaic_0001>

<llo_original>
// kernel: tpu_custom_call.1
$region0: #{tpu_custom_call.1}
  #allocation0 [shape = 'u32[]', space=smem, size = 0x4, offset = 0x4, fixed_abs, tag = 'smem constant byte address 0x4 - core index']
  #allocation1 [shape = 'u32[144,128]{1,0:T(1,128)}', space=vmem, size = 0x12000, scoped, tag = 'internal scratch']
  %s0 = inlined_call_operand.hbm [shape: f32[2,4,2,128], index: 0, kind: input, shape index: {}]
  %s1 = inlined_call_operand.hbm [shape: s32[2,2,128], index: 1, kind: input, shape index: {}]
  %s2 = inlined_call_operand.hbm [shape: f32[2,1,4,128], index: 2, kind: output, shape index: {0}]
  %s3 = inlined_call_operand.vmem [shape: s32[2,1,8,1], index: 3, kind: output, shape index: {1}]
  %4 = xla_tuple %s2, %s3
  %s5 = sld [smem:[#allocation0]]
  $region61: #{tpu_custom_call.1} parent=0
    _
  %s7 = ssub.s32 1, %s5
  %s8 = scalar_select 0, %s7, %s5
  $region1: #{tpu_custom_call.1} parent=0
    #allocation2 [shape = 'u8[8192]{0}', space=vmem, size = 0x2000, scoped, tag = 'input window, operand 0']
    #allocation3 [shape = 's32[2]{0}', space=sflag, size = 0x8, scoped, tag = 'scoped memory for tpu_custom_call.1']
    #allocation4 [shape = 's32[2]{0}', space=sflag, size = 0x8, scoped, tag = 'scoped memory for tpu_custom_call.1']
    #allocation5 [shape = 'u8[2048]{0}', space=vmem, size = 0x800, scoped, tag = 'input window, operand 1']
    #allocation6 [shape = 's32[2]{0}', space=sflag, size = 0x8, scoped, tag = 'scoped memory for tpu_custom_call.1']
    #allocation7 [shape = 'u8[4096]{0}', space=vmem, size = 0x1000, scoped, tag = 'output window, operand 0']
    %9 = vsyncpa [#allocation3], 0
    %s10 = scalar_lea.sflag [#allocation3], 1
    %11 = vsyncpa %s10, 0
    %12 = vsyncpa [#allocation6], 0
    %s13 = scalar_lea.sflag [#allocation6], 1
    %14 = vsyncpa %s13, 0
    %15 = vsyncpa [#allocation4], 0
    %s16 = scalar_lea.sflag [#allocation4], 1
    %17 = vsyncpa %s16, 0
    loop: start=0, step=1, limit=4
    $region2: #{tpu_custom_call.1} parent=1 // loop_pre_header
      _
    $region3: #{tpu_custom_call.1} parent=1 // loop_header
      %s19 = sphi 0, %s23
      %p20 = scmp.ge.s32.totalorder %s19, 4
      %s26 = sphi 0, %s45
      %s27 = sphi 0, %s41
      %s28 = sphi 0, %s37
      %s29 = sphi 0, %s26
      %s30 = sphi 0, %s27
      %s31 = sphi 0, %s28
      %s32 = sphi 0, %s29
      %s33 = sphi 0, %s30
      %s34 = sphi 0, %s31
      %s52 = sphi 0, %s54
      %s55 = sphi 0, %s52
      %s56 = sphi 0, %s55
      %s72 = sphi 0, %s56
      %s82 = sphi 0, %s84
      %s85 = sphi 0, %s82
      %s86 = sphi 0, %s85
      %s102 = sphi 0, %s86
      %s110 = sphi 0, %s112
      %s113 = sphi 0, %s110
      %s114 = sphi 0, %s113
      %s130 = sphi 0, %s114
      %s138 = sphi 0, %s140
      %s141 = sphi 0, %s138
      %s142 = sphi 0, %s141
      %s158 = sphi 0, %s142
    $region4: #{tpu_custom_call.1} parent=1 // loop_header_branch
      %22 = sbr.rel (%p20) target = $region8
    $region5: #{tpu_custom_call.1} parent=1 // loop_body
      %s24 = ssub.s32 %s19, 1
      %s25 = ssub.s32 %s19, 2
      %s35 = sadd.s32 1, %s28
      %p36 = scmp.ge.s32.totalorder %s35, 1
      %s37 = scalar_select %p36, 0, %s35
      %s38 = sadd.s32 1, %s27
      %s39 = scalar_select %p36, %s38, %s27
      %p40 = scmp.ge.s32.totalorder %s39, 1
      %s41 = scalar_select %p40, 0, %s39
      %s42 = sadd.s32 1, %s26
      %s43 = scalar_select %p40, %s42, %s26
      %p44 = scmp.ge.s32.totalorder %s43, 2
      %s45 = scalar_select %p44, 0, %s43
      %s46 = sadd.s32 %s27, %s28
      %s47 = sadd.s32 %s41, %s37
      %s48 = ssub.s32 %s26, %s45
      %s49 = ssub.s32 %s46, %s47
      %s50 = sor.u32 %s48, %s49
      %p51 = scmp.eq.s32.totalorder %s50, 0
      %s53 = sadd.s32 %s52, 1
      %s54 = scalar_select %p51, %s52, %s53
      %p57 = pneg %p51
      %p58 = scmp.eq.s32.totalorder %s19, 1
      %p59 = por %p57, %p58
      %p60 = scmp.ne.s32.totalorder %s52, %s55
      %p61 = scmp.eq.s32.totalorder %s19, 0
      %p62 = por %p60, %p61
      %p63 = scmp.ne.s32.totalorder %s52, %s55
      %p64 = scmp.eq.s32.totalorder %s24, 1
      %p65 = por %p63, %p64
      %p66 = scmp.ne.s32.totalorder %s55, %s56
      %p67 = scmp.eq.s32.totalorder %s24, 0
      %p68 = por %p66, %p67
      %p69 = scmp.ne.s32.totalorder %s55, %s56
      %p70 = scmp.eq.s32.totalorder %s25, 1
      %p71 = por %p69, %p70
      %p73 = scmp.ne.s32.totalorder %s56, %s72
      %p74 = scmp.eq.s32.totalorder %s25, 0
      %p75 = por %p73, %p74
      %s76 = sadd.s32 %s27, %s28
      %s77 = sadd.s32 %s41, %s37
      %s78 = ssub.s32 %s26, %s45
      %s79 = ssub.s32 %s76, %s77
      %s80 = sor.u32 %s78, %s79
      %p81 = scmp.eq.s32.totalorder %s80, 0
      %s83 = sadd.s32 %s82, 1
      %s84 = scalar_select %p81, %s82, %s83
      %p87 = pneg %p81
      %p88 = scmp.eq.s32.totalorder %s19, 1
      %p89 = por %p87, %p88
      %p90 = scmp.ne.s32.totalorder %s82, %s85
      %p91 = scmp.eq.s32.totalorder %s19, 0
      %p92 = por %p90, %p91
      %p93 = scmp.ne.s32.totalorder %s82, %s85
      %p94 = scmp.eq.s32.totalorder %s24, 1
      %p95 = por %p93, %p94
      %p96 = scmp.ne.s32.totalorder %s85, %s86
      %p97 = scmp.eq.s32.totalorder %s24, 0
      %p98 = por %p96, %p97
      %p99 = scmp.ne.s32.totalorder %s85, %s86
      %p100 = scmp.eq.s32.totalorder %s25, 1
      %p101 = por %p99, %p100
      %p103 = scmp.ne.s32.totalorder %s86, %s102
      %p104 = scmp.eq.s32.totalorder %s25, 0
      %p105 = por %p103, %p104
      %s106 = ssub.s32 %s26, %s45
      %s107 = ssub.s32 %s27, %s41
      %s108 = sor.u32 %s106, %s107
      %p109 = scmp.eq.s32.totalorder %s108, 0
      %s111 = sadd.s32 %s110, 1
      %s112 = scalar_select %p109, %s110, %s111
      %p115 = pneg %p109
      %p116 = scmp.eq.s32.totalorder %s19, 1
      %p117 = por %p115, %p116
      %p118 = scmp.ne.s32.totalorder %s110, %s113
      %p119 = scmp.eq.s32.totalorder %s19, 0
      %p120 = por %p118, %p119
      %p121 = scmp.ne.s32.totalorder %s110, %s113
      %p122 = scmp.eq.s32.totalorder %s24, 1
      %p123 = por %p121, %p122
      %p124 = scmp.ne.s32.totalorder %s113, %s114
      %p125 = scmp.eq.s32.totalorder %s24, 0
      %p126 = por %p124, %p125
      %p127 = scmp.ne.s32.totalorder %s113, %s114
      %p128 = scmp.eq.s32.totalorder %s25, 1
      %p129 = por %p127, %p128
      %p131 = scmp.ne.s32.totalorder %s114, %s130
      %p132 = scmp.eq.s32.totalorder %s25, 0
      %p133 = por %p131, %p132
      %s134 = ssub.s32 %s26, %s45
      %s135 = ssub.s32 %s27, %s41
      %s136 = sor.u32 %s134, %s135
      %p137 = scmp.eq.s32.totalorder %s136, 0
      %s139 = sadd.s32 %s138, 1
      %s140 = scalar_select %p137, %s138, %s139
      %p143 = pneg %p137
      %p144 = scmp.eq.s32.totalorder %s19, 1
      %p145 = por %p143, %p144
      %p146 = scmp.ne.s32.totalorder %s138, %s141
      %p147 = scmp.eq.s32.totalorder %s19, 0
      %p148 = por %p146, %p147
      %p149 = scmp.ne.s32.totalorder %s138, %s141
      %p150 = scmp.eq.s32.totalorder %s24, 1
      %p151 = por %p149, %p150
      %p152 = scmp.ne.s32.totalorder %s141, %s142
      %p153 = scmp.eq.s32.totalorder %s24, 0
      %p154 = por %p152, %p153
      %p155 = scmp.ne.s32.totalorder %s141, %s142
      %p156 = scmp.eq.s32.totalorder %s25, 1
      %p157 = por %p155, %p156
      %p159 = scmp.ne.s32.totalorder %s142, %s158
      %p160 = scmp.eq.s32.totalorder %s25, 0
      %p161 = por %p159, %p160
      %p162 = scmp.le.s32.totalorder 1, %s19
      %p163 = scmp.lt.s32.totalorder %s19, 3
      %p164 = pnand %p162, %p163
      %p165 = pneg %p164
      // Predicated region
      $region9: #{tpu_custom_call.1} parent=5 // pred_check
        _
      $region10: #{tpu_custom_call.1} parent=5 // pred_check_branch
        %167 = sbr.rel (%p164) target = $region12
      $region11: #{tpu_custom_call.1} parent=5 // pred_region
        %s168 = ssub.s32 %s19, 1
      $region12: #{tpu_custom_call.1} parent=5 // pred_fallthru
        _
      %p169 = scmp.lt.s32.totalorder %s19, 2
      // Predicated region
      $region13: #{tpu_custom_call.1} parent=5 // pred_check
        %p170 = pneg %p169
      $region14: #{tpu_custom_call.1} parent=5 // pred_check_branch
        %172 = sbr.rel (%p170) target = $region16
      $region15: #{tpu_custom_call.1} parent=5 // pred_region
        // Predicated region
        $region17: #{tpu_custom_call.1} parent=15 // pred_check
          %p173 = pneg %p62
        $region18: #{tpu_custom_call.1} parent=15 // pred_check_branch
          %175 = sbr.rel (%p173) target = $region20
        $region19: #{tpu_custom_call.1} parent=15 // pred_region
          %s176 = sand.u32 %s52, 1
          %s177 = scalar_lea.sflag [#allocation3], %s176
          %s178 = sand.u32 %s52, 1
          %s179 = smul.addr %s178, 8
          %s180 = scalar_lea.vmem [#allocation2], %s179
          %s181 = sadd.s32 %s27, %s28
          %s183 = ssub.s32 128, 128
          %184 = vsyncadd %s177, %s183
          %s185 = smul.addr %s26, 4
          %s186 = sadd.s32 %s181, %s185
          %s187 = smul.addr %s186, 32
          %s188 = scalar_lea.hbm %s0, %s187
          %s189 = sshll.u32 %s180, 4
          %s190 = int_to_ptr.vmem [resolvable:$true] %s189
          %195 = dma.hbm_to_vmem [thread:$0]  %s188, 128, %s190, %s177, 32, 32, 2
        $region20: #{tpu_custom_call.1} parent=15 // pred_fallthru
          _
        // Predicated region
        $region21: #{tpu_custom_call.1} parent=15 // pred_check
          %p196 = pneg %p92
        $region22: #{tpu_custom_call.1} parent=15 // pred_check_branch
          %198 = sbr.rel (%p196) target = $region24
        $region23: #{tpu_custom_call.1} parent=15 // pred_region
          %s199 = sand.u32 %s82, 1
          %s200 = scalar_lea.sflag [#allocation6], %s199
          %s201 = sand.u32 %s82, 1
          %s202 = smul.addr %s201, 2
          %s203 = scalar_lea.vmem [#allocation5], %s202
          %s204 = sadd.s32 %s27, %s28
          %s206 = ssub.s32 32, 32
          %207 = vsyncadd %s200, %s206
          %s208 = sadd.s32 %s204, %s26
          %s209 = smul.addr %s208, 32
          %s210 = scalar_lea.hbm %s1, %s209
          %s212 = sshll.u32 %s203, 4
          %s213 = int_to_ptr.vmem [resolvable:$true] %s212
          %215 = dma.hbm_to_vmem [thread:$0]  %s210, 32, %s213, %s200
        $region24: #{tpu_custom_call.1} parent=15 // pred_fallthru
          _
      $region16: #{tpu_custom_call.1} parent=5 // pred_fallthru
        _
      %p216 = scmp.le.s32.totalorder 1, %s19
      %p217 = scmp.lt.s32.totalorder %s19, 3
      %p218 = pnand %p216, %p217
      %p219 = pneg %p218
      // Predicated region
      $region25: #{tpu_custom_call.1} parent=5 // pred_check
        _
      $region26: #{tpu_custom_call.1} parent=5 // pred_check_branch
        %221 = sbr.rel (%p218) target = $region28
      $region27: #{tpu_custom_call.1} parent=5 // pred_region
        %s222 = ssub.s32 %s19, 1
        %s223 = sand.u32 %s55, 1
        %s224 = scalar_lea.sflag [#allocation3], %s223
        %s225 = sand.u32 %s55, 1
        %s226 = smul.addr %s225, 8
        %s227 = scalar_lea.vmem [#allocation2], %s226
        // Predicated region
        $region29: #{tpu_custom_call.1} parent=27 // pred_check
          %p228 = pneg %p68
        $region30: #{tpu_custom_call.1} parent=27 // pred_check_branch
          %230 = sbr.rel (%p228) target = $region32
        $region31: #{tpu_custom_call.1} parent=27 // pred_region
          %231 = dma.done %s224, 128
        $region32: #{tpu_custom_call.1} parent=27 // pred_fallthru
          _
        %s232 = sand.u32 %s85, 1
        %s233 = scalar_lea.sflag [#allocation6], %s232
        %s234 = sand.u32 %s85, 1
        %s235 = smul.addr %s234, 2
        %s236 = scalar_lea.vmem [#allocation5], %s235
        // Predicated region
        $region33: #{tpu_custom_call.1} parent=27 // pred_check
          %p237 = pneg %p98
        $region34: #{tpu_custom_call.1} parent=27 // pred_check_branch
          %239 = sbr.rel (%p237) target = $region36
        $region35: #{tpu_custom_call.1} parent=27 // pred_region
          %240 = dma.done %s233, 32
        $region36: #{tpu_custom_call.1} parent=27 // pred_fallthru
          _
        %s241 = sand.u32 %s55, 1
        %s242 = scalar_lea.sflag [#allocation3], %s241
        %s243 = sand.u32 %s55, 1
        %s244 = smul.addr %s243, 8
        %s245 = scalar_lea.vmem [#allocation2], %s244
        %p246 = pneg %p68
        %p247 = pneg %p65
        %s248 = sand.u32 %s85, 1
        %s249 = scalar_lea.sflag [#allocation6], %s248
        %s250 = sand.u32 %s85, 1
        %s251 = smul.addr %s250, 2
        %s252 = scalar_lea.vmem [#allocation5], %s251
        %p253 = pneg %p98
        %p254 = pneg %p95
        %p255 = pneg %p126
        %p256 = pneg %p123
        %s257 = sand.u32 %s113, 1
        %s258 = scalar_lea.sflag [#allocation4], %s257
        %s259 = sand.u32 %s113, 1
        %s260 = smul.addr %s259, 4
        %s261 = scalar_lea.vmem [#allocation7], %s260
        %p262 = pneg %p154
        %p263 = pneg %p151
        %p264 = scmp.lt.s32.totalorder %s29, 1
        %s265 = scalar_select %p264, %s29, 1
        %p266 = scmp.lt.s32.totalorder %s30, 0
        %s267 = scalar_select %p266, %s30, 0
        %s268 = sadd.s32 %s267, %s265
        %s269 = smul.addr %s268, 8
        %s270 = scalar_lea.vmem %s3, %s269
        %s271 = sadd.s32 %s30, %s31
        %s272 = sadd.s32 %s30, %s31
        %p273 = scmp.lt.s32.totalorder %s29, 1
        %s274 = scalar_select %p273, %s29, 1
        %p275 = scmp.lt.s32.totalorder %s30, 0
        %s276 = scalar_select %p275, %s30, 0
        %s277 = sadd.s32 %s276, %s274
        %s278 = smul.addr %s277, 8
        %s279 = scalar_lea.vmem %s3, %s278
        %p280 = scmp.eq.s32.totalorder %s31, 0
        // Predicated region
        $region37: #{tpu_custom_call.1} parent=27 // pred_check
          %p281 = pneg %p280
        $region38: #{tpu_custom_call.1} parent=27 // pred_check_branch
          %283 = sbr.rel (%p281) target = $region40
        $region39: #{tpu_custom_call.1} parent=27 // pred_region
          %284 = vst [vmem:[%s261] sm:$0xf] 0.0
          %vm285 = vcmask 7168
          %286 = vst.msk [vmem:[%s279] sm:$0xff] %vm285, 0
        $region40: #{tpu_custom_call.1} parent=27 // pred_fallthru
          _
        %v287 = vlaneseq
        %v288 = vshrl.u32 %v287, 7
        %v289 = vld [vmem:[%s227] sm:$0x3]
        %v290 = vld [vmem:[%s227 + $0x2] sm:$0x3]
        %v291 = vld [vmem:[%s227 + $0x4] sm:$0x3]
        %v292 = vld [vmem:[%s227 + $0x6] sm:$0x3]
        %vm293 = vcmask 1041408
        %v294 = vsel %vm293, %v289, -inf
        %v295 = vsel %vm293, %v290, -inf
        %v296 = vsel %vm293, %v291, -inf
        %v297 = vsel %vm293, %v292, -inf
        %v298 = vmax.f32 %v294, %v295
        %v299 = vmax.f32 %v296, %v297
        %v300 = vmax.f32 %v298, %v299
        %v301 = vsub.f32 %v289, %v300
        %v302 = vsub.f32 %v290, %v300
        %v303 = vsub.f32 %v291, %v300
        %v304 = vsub.f32 %v292, %v300
        %v305 = vmul.f32 %v301, 1.442695
        %v306 = vpow.pop %v305
        %v307 = vmul.f32 %v302, 1.442695
        %v308 = vpow.pop %v307
        %v309 = vmul.f32 %v303, 1.442695
        %v310 = vpow.pop %v309
        %v311 = vmul.f32 %v304, 1.442695
        %v312 = vpow.pop %v311
        %v313 = vsel %vm293, %v306, 0.0
        %v314 = vsel %vm293, %v308, 0.0
        %v315 = vadd.f32 %v313, %v314
        %v316 = vsel %vm293, %v310, 0.0
        %v317 = vadd.f32 %v315, %v316
        %v318 = vsel %vm293, %v312, 0.0
        %v319 = vadd.f32 %v317, %v318
        %v320 = vrcp.pop %v319
        %v321 = vld [vmem:[%s261] sm:$0xf]
        %v322 = vmul.f32 %v306, %v320
        %v323 = vmul.f32 %v308, %v320
        %v324 = vmul.f32 %v310, %v320
        %v325 = vmul.f32 %v312, %v320
        %v326 = vsel %vm293, %v322, 0.0
        %v327 = vrot.slane %v326, 4
        %v328 = vadd.f32 %v326, %v327
        %v329 = vrot.slane %v328, 2
        %v330 = vadd.f32 %v328, %v329
        %v331 = vrot.slane %v330, 1
        %v332 = vadd.f32 %v330, %v331
        %v333 = vsel %vm293, %v323, 0.0
        %v334 = vrot.slane %v333, 4
        %v335 = vadd.f32 %v333, %v334
        %v336 = vrot.slane %v335, 2
        %v337 = vadd.f32 %v335, %v336
        %v338 = vrot.slane %v337, 1
        %v339 = vadd.f32 %v337, %v338
        %v340 = vsel %vm293, %v324, 0.0
        %v341 = vrot.slane %v340, 4
        %v342 = vadd.f32 %v340, %v341
        %v343 = vrot.slane %v342, 2
        %v344 = vadd.f32 %v342, %v343
        %v345 = vrot.slane %v344, 1
        %v346 = vadd.f32 %v344, %v345
        %v347 = vsel %vm293, %v325, 0.0
        %v348 = vrot.slane %v347, 4
        %v349 = vadd.f32 %v347, %v348
        %v350 = vrot.slane %v349, 2
        %v351 = vadd.f32 %v349, %v350
        %v352 = vrot.slane %v351, 1
        %v353 = vadd.f32 %v351, %v352
        %vm358 = vcmask 1041409
        %v359 = vsel %vm358, %v339, %v332
        %vm360 = vcmask 1042434
        %v361 = vsel %vm360, %v346, %v359
        %vm362 = vcmask 1043459
        %v363 = vsel %vm362, %v353, %v361
        %v365 = vadd.f32 %v321, %v363
        %366 = vst [vmem:[%s261] sm:$0xf] %v365
        %v367 = vld [vmem:[%s236] sm:$0x3]
        %v369 = vunpack.c.l.s4 1966171168
        %v370 = vunpack.c.0.s8 %v369
        %v371 = vlaneseq
        %v372 = vshrl.u32 %v371, 7
        %v373 = vsub.s32 %v370, %v372
        %v374 = vrot.slane %v367, %v373
        %v375 = vcombine.high %v374, %v374
        %v377 = vunpack.c.l.s4 1966171168
        %v378 = vunpack.c.0.s8 %v377
        %v379 = vlaneseq
        %v380 = vshrl.u32 %v379, 7
        %v381 = vsub.s32 %v378, %v380
        %v382 = vrot.slane %v374, %v381
        %v384 = vunpack.c.l.s4 1966171168
        %v385 = vunpack.c.0.s8 %v384
        %v386 = vlaneseq
        %v387 = vshrl.u32 %v386, 7
        %v388 = vsub.s32 %v385, %v387
        %v389 = vrot.slane %v375, %v388
        %v390 = vlaneseq
        %v391 = vshrl.u32 %v390, 7
        %v392 = vsub.s32 0, %v391
        %v393 = vrot.slane %v382, %v392
        %v394 = vlaneseq
        %v395 = vshrl.u32 %v394, 7
        %v396 = vsub.s32 0, %v395
        %v397 = vrot.slane %v389, %v396
        %vm398 = vcmp.eq.s32.totalorder %v393, %v288
        %vm399 = vcmp.eq.s32.totalorder %v397, %v288
        %v400 = vsel %vm398, 1, 0
        %v401 = vsel %vm399, 1, 0
        %v402 = vld [vmem:[%s279] sm:$0xff]
        %v403 = vadd.s32 %v400, %v401
        %v404 = vand.u32 %v403, 65535
        %v405 = vshrl.u32 %v403, 16
        %v406 = vcvt.s32.f32 %v404
        %v407 = vcvt.s32.f32 %v405
        %408 = vadd.xlane.f32.xlu0 %v406
        %v409 = vpop.xlane.xlu0 %408
        %410 = vadd.xlane.f32.xlu0 %v407
        %v411 = vpop.xlane.xlu0 %410
        %v412 = vcvt.f32.s32 %v409
        %v413 = vcvt.f32.s32 %v411
        %v414 = vshll.u32 %v413, 16
        %v415 = vadd.s32 %v414, %v412
        %v416 = vadd.s32 %v402, %v415
        %vm417 = vcmask 7168
        %418 = vst.msk [vmem:[%s279] sm:$0xff] %vm417, %v416
        %s419 = sand.u32 %s113, 1
        %s420 = scalar_lea.sflag [#allocation4], %s419
        %s421 = sand.u32 %s113, 1
        %s422 = smul.addr %s421, 4
        %s423 = scalar_lea.vmem [#allocation7], %s422
        %p424 = scmp.lt.s32.totalorder %s29, 1
        %s425 = scalar_select %p424, %s29, 1
        %p426 = scmp.lt.s32.totalorder %s30, 0
        %s427 = scalar_select %p426, %s30, 0
        %s428 = sadd.s32 %s427, %s425
        %s429 = smul.addr %s428, 8
        %s430 = scalar_lea.vmem %s3, %s429
        // Predicated region
        $region41: #{tpu_custom_call.1} parent=27 // pred_check
          %p431 = pneg %p123
        $region42: #{tpu_custom_call.1} parent=27 // pred_check_branch
          %433 = sbr.rel (%p431) target = $region44
        $region43: #{tpu_custom_call.1} parent=27 // pred_region
          %s435 = ssub.s32 64, 64
          %436 = vsyncadd %s420, %s435
          %s437 = sadd.s32 %s30, %s29
          %s438 = smul.addr %s437, 64
          %s439 = scalar_lea.hbm %s2, %s438
          %s441 = sshll.u32 %s423, 4
          %s442 = int_to_ptr.vmem [resolvable:$true] %s441
          %444 = dma.vmem_to_hbm [thread:$0]  %s442, 64, %s439, %s420
        $region44: #{tpu_custom_call.1} parent=27 // pred_fallthru
          _
        // Predicated region
        $region45: #{tpu_custom_call.1} parent=27 // pred_check
          %p445 = pneg %p151
        $region46: #{tpu_custom_call.1} parent=27 // pred_check_branch
          %447 = sbr.rel (%p445) target = $region48
        $region47: #{tpu_custom_call.1} parent=27 // pred_region
          _
        $region48: #{tpu_custom_call.1} parent=27 // pred_fallthru
          _
      $region28: #{tpu_custom_call.1} parent=5 // pred_fallthru
        _
      %p448 = scmp.le.s32.totalorder 2, %s19
      // Predicated region
      $region49: #{tpu_custom_call.1} parent=5 // pred_check
        %p449 = pneg %p448
      $region50: #{tpu_custom_call.1} parent=5 // pred_check_branch
        %451 = sbr.rel (%p449) target = $region52
      $region51: #{tpu_custom_call.1} parent=5 // pred_region
        %s452 = ssub.s32 %s19, 2
        // Predicated region
        $region53: #{tpu_custom_call.1} parent=51 // pred_check
          %p453 = pneg %p129
        $region54: #{tpu_custom_call.1} parent=51 // pred_check_branch
          %455 = sbr.rel (%p453) target = $region56
        $region55: #{tpu_custom_call.1} parent=51 // pred_region
          %s456 = sand.u32 %s114, 1
          %s457 = scalar_lea.sflag [#allocation4], %s456
          %s458 = sand.u32 %s114, 1
          %s459 = smul.addr %s458, 4
          %s460 = scalar_lea.vmem [#allocation7], %s459
          %461 = dma.done %s457, 64
        $region56: #{tpu_custom_call.1} parent=51 // pred_fallthru
          _
        // Predicated region
        $region57: #{tpu_custom_call.1} parent=51 // pred_check
          %p462 = pneg %p157
        $region58: #{tpu_custom_call.1} parent=51 // pred_check_branch
          %464 = sbr.rel (%p462) target = $region60
        $region59: #{tpu_custom_call.1} parent=51 // pred_region
          %p465 = scmp.lt.s32.totalorder %s32, 1
          %s466 = scalar_select %p465, %s32, 1
          %p467 = scmp.lt.s32.totalorder %s33, 0
          %s468 = scalar_select %p467, %s33, 0
          %s469 = sadd.s32 %s468, %s466
          %s470 = smul.addr %s469, 8
          %s471 = scalar_lea.vmem %s3, %s470
        $region60: #{tpu_custom_call.1} parent=51 // pred_fallthru
          _
      $region52: #{tpu_custom_call.1} parent=5 // pred_fallthru
        _
    $region6: #{tpu_custom_call.1} parent=1 // loop_footer
      %s23 = sadd.s32 1, %s19
    $region7: #{tpu_custom_call.1} parent=1 // loop_footer_branch
      %18 = sbr.rel target = $region3
    $region8: #{tpu_custom_call.1} parent=1 // loop_exit
      _
    %472 = vsyncpa [#allocation3], 1
    %s473 = scalar_lea.sflag [#allocation3], 1
    %474 = vsyncpa %s473, 1
    %475 = vsyncpa [#allocation6], 1
    %s476 = scalar_lea.sflag [#allocation6], 1
    %477 = vsyncpa %s476, 1
    %478 = vsyncpa [#allocation4], 1
    %s479 = scalar_lea.sflag [#allocation4], 1
    %480 = vsyncpa %s479, 1

</llo_original>
